<compile_context>
chip_gen: v7x
topology: tpu7x:2x2x1
jax: 0.10.0
libtpu: 0.0.40
codegen_flags: <defaults>
</compile_context>

<pallas_src>
import functools

import jax
import jax.numpy as jnp
import numpy as np
from jax.experimental import pallas as pl
from jax.experimental.pallas import tpu as pltpu


def _round_up(x, m):
    return (x + m - 1) // m * m


def _tdnn_kernel(xm_ref, xh_ref, w_ref, b_ref, s_ref, t_ref, o_ref,
                 *, kernel_size, dilation):
    # xm_ref : (1, C_in, L_tile)       bf16  main time tile
    # xh_ref : (1, 1, C_in, halo_n)    bf16  halo columns following the tile
    # w_ref  : (C_out, K*C_in)         bf16  tap-major flattened conv weight
    # b_ref  : (C_out, 1)              f32   conv bias
    # s_ref  : (C_out, 1)              f32   folded BN scale  = gamma/sqrt(var+eps)
    # t_ref  : (C_out, 1)              f32   folded BN shift  = beta - mean*scale
    # o_ref  : (1, C_out, L_tile)
    x_m = xm_ref[0]                                   # (C_in, L_tile)
    x_h = xh_ref[0, 0]                                # (C_in, halo_n)
    l_tile = x_m.shape[-1]

    # Window = tile + halo; build the stacked (K*C_in, L_tile) operand whose
    # k-th row block is the window shifted by k*dilation.
    window = jnp.concatenate([x_m, x_h], axis=-1)     # (C_in, L_tile + halo_n)
    taps = [window[:, k * dilation: k * dilation + l_tile]
            for k in range(kernel_size)]
    stacked = jnp.concatenate(taps, axis=0) if kernel_size > 1 else taps[0]

    # Single deep MXU contraction over K*C_in, f32 accumulation.
    acc = jnp.dot(w_ref[...], stacked, preferred_element_type=jnp.float32)

    acc = jnp.maximum(acc + b_ref[...], 0.0)          # conv bias + ReLU (f32)
    o_ref[0] = (acc * s_ref[...] + t_ref[...]).astype(o_ref.dtype)   # folded BN


def _pick_l_tile(c_in, c_out, kernel_size, l_out, *, max_tile=1024,
                 budget_bytes=16 << 20):
    """Largest multiple-of-128 time tile whose per-step footprint fits a
    conservative VMEM budget (valid for v5e/v6e/v7x default scoped limits)."""
    lt = min(max_tile, _round_up(max(l_out, 1), 128))
    lt -= lt % 128
    while lt > 128:
        per_step = (2 * (c_in * lt * 2 + c_out * lt * 4)   # dbl-buffered in/out
                    + kernel_size * c_in * lt * 2          # stacked operand
                    + c_out * lt * 4)                      # f32 accumulator
        weight_bytes = kernel_size * c_out * c_in * 2
        if per_step + weight_bytes <= budget_bytes:
            break
        lt -= 128
    return max(lt, 128)


def tdnn_block(x, weight, bias, gamma, beta, running_mean, running_var,
               *, kernel_size, dilation, eps=1e-5, l_tile=None):
    """x: (B, C_in, L) f32.  weight: (C_out, C_in, K).  Returns (B, C_out, L_out)."""
    B, C_in, L = x.shape
    C_out = weight.shape[0]
    K = kernel_size

    # speechbrain "same" padding (stride=1): symmetric floor padding.
    diff = dilation * (K - 1)
    pad = diff // 2
    if pad >= L:
        raise ValueError("reflect padding requires dilation*(kernel_size-1)//2 < L")
    L_out = L + 2 * pad - diff            # == L for odd kernels (even diff)

    if l_tile is None:
        l_tile = _pick_l_tile(C_in, C_out, K, L_out)
    n_t = -(-L_out // l_tile)
    L_main = n_t * l_tile
    halo_n = max(diff, 1)

    # Single fused (reflect + lane-alignment) padded bf16 copy of the input.
    xb = x.astype(jnp.bfloat16)
    left = xb[:, :, 1:pad + 1][:, :, ::-1]                       # reflect left
    right = xb[:, :, L - 1 - pad:L - 1][:, :, ::-1]              # reflect right
    tail = L_main + halo_n - (L + 2 * pad)
    zeros = jnp.zeros((B, C_in, tail), jnp.bfloat16)
    x_full = jnp.concatenate([left, xb, right, zeros], axis=-1)  # (B,C_in,L_main+halo_n)

    # Tiny per-tile halo array: columns [(j+1)*l_tile, (j+1)*l_tile + halo_n).
    cols = (jnp.arange(n_t)[:, None] + 1) * l_tile + jnp.arange(halo_n)[None, :]
    x_halo = jnp.transpose(x_full[:, :, cols], (0, 2, 1, 3))     # (B,n_t,C_in,halo_n)

    # Fold the K taps into the contraction dim; fold BN into scale/shift.
    w2d = jnp.transpose(weight, (0, 2, 1)).reshape(C_out, K * C_in).astype(jnp.bfloat16)
    scale = gamma / jnp.sqrt(running_var + eps)
    shift = beta - running_mean * scale
    col = lambda p: p.reshape(C_out, 1).astype(jnp.float32)

    kernel = functools.partial(_tdnn_kernel, kernel_size=K, dilation=dilation)
    const = lambda b, j: (0, 0)
    # NOTE: weight/param blocks have constant index maps so they are not
    # re-DMA'd across grid steps; pipeline_mode=pl.Buffered(1) could further
    # trim their VMEM double-buffers if needed for very large C_out.

    out = pl.pallas_call(
        kernel,
        out_shape=jax.ShapeDtypeStruct((B, C_out, L_main), x.dtype),
        grid=(B, n_t),
        in_specs=[
            pl.BlockSpec((1, C_in, l_tile), lambda b, j: (b, 0, j)),
            pl.BlockSpec((1, 1, C_in, halo_n), lambda b, j: (b, j, 0, 0)),
            pl.BlockSpec((C_out, K * C_in), const),
            pl.BlockSpec((C_out, 1), const),
            pl.BlockSpec((C_out, 1), const),
            pl.BlockSpec((C_out, 1), const),
        ],
        out_specs=pl.BlockSpec((1, C_out, l_tile), lambda b, j: (b, 0, j)),
        compiler_params=pltpu.CompilerParams(
            dimension_semantics=("parallel", "parallel")),
    )(x_full, x_halo, w2d, col(bias), col(scale), col(shift))

    return out[:, :, :L_out]


def _reference(x, weight, bias, gamma, beta, mean, var, *, kernel_size, dilation,
               eps=1e-5):
    # Matches the kernel's bf16 MXU operands (f32 accumulation / f32 epilogue).
    xq = x.astype(jnp.bfloat16).astype(jnp.float32)
    wq = weight.astype(jnp.bfloat16).astype(jnp.float32)
    pad = dilation * (kernel_size - 1) // 2
    x_pad = jnp.pad(xq, ((0, 0), (0, 0), (pad, pad)), mode="reflect")
    y = jax.lax.conv_general_dilated(
        x_pad, wq, window_strides=(1,), padding="VALID",
        rhs_dilation=(dilation,), dimension_numbers=("NCH", "OIH", "NCH"))
    y = jnp.maximum(y + bias[None, :, None], 0.0)
    scale = gamma / jnp.sqrt(var + eps)
    shift = beta - mean * scale
    return y * scale[None, :, None] + shift[None, :, None]


if __name__ == "__main__":
    # Small shapes consistent with the module: x is (batch, channels, time).
    B, C_IN, C_OUT, L = 2, 16, 32, 64
    K, DIL = 3, 2

    key = jax.random.PRNGKey(0)
    kx, kw, kb, kg, kbt, km, kv = jax.random.split(key, 7)

    x = jax.random.normal(kx, (B, C_IN, L), jnp.float32)
    weight = jax.random.normal(kw, (C_OUT, C_IN, K), jnp.float32) * 0.1
    bias = jax.random.normal(kb, (C_OUT,), jnp.float32) * 0.1
    gamma = 1.0 + 0.1 * jax.random.normal(kg, (C_OUT,), jnp.float32)
    beta = 0.1 * jax.random.normal(kbt, (C_OUT,), jnp.float32)
    running_mean = 0.1 * jax.random.normal(km, (C_OUT,), jnp.float32)
    running_var = 1.0 + 0.1 * jax.random.uniform(kv, (C_OUT,), jnp.float32)

    out = tdnn_block(x, weight, bias, gamma, beta, running_mean, running_var,
                     kernel_size=K, dilation=DIL)
    out = jax.block_until_ready(out)

    ref = _reference(x, weight, bias, gamma, beta, running_mean, running_var,
                     kernel_size=K, dilation=DIL)
    np.testing.assert_allclose(np.asarray(out), np.asarray(ref), rtol=2e-3, atol=2e-3)

    print("KERNEL_OK")
</pallas_src>

<mosaic_0001>
module attributes {stable_mosaic.version = 11 : i64} {
  func.func @_tdnn_kernel(%arg0: i32, %arg1: i32, %arg2: memref<1x16x128xbf16, #tpu.memory_space<vmem>>, %arg3: memref<1x1x16x4xbf16, #tpu.memory_space<vmem>>, %arg4: memref<32x48xbf16, #tpu.memory_space<vmem>>, %arg5: memref<32x1xf32, #tpu.memory_space<vmem>>, %arg6: memref<32x1xf32, #tpu.memory_space<vmem>>, %arg7: memref<32x1xf32, #tpu.memory_space<vmem>>, %arg8: memref<1x32x128xf32, #tpu.memory_space<vmem>>) attributes {dimension_semantics = [#tpu.dimension_semantics<parallel>, #tpu.dimension_semantics<parallel>], iteration_bounds = array<i64: 2, 1>, scalar_prefetch = 0 : i64, scratch_operands = 0 : i64, tpu.core_type = #tpu.core_type<tc>, window_params = [{transform_indices = @transform_0, window_bounds = array<i64: 1, 16, 128>}, {transform_indices = @transform_1, window_bounds = array<i64: 1, 1, 16, 4>}, {pipeline_mode = #tpu.pipeline_mode<synchronous>, transform_indices = @transform_2, window_bounds = array<i64: 32, 48>}, {pipeline_mode = #tpu.pipeline_mode<synchronous>, transform_indices = @transform_3, window_bounds = array<i64: 32, 1>}, {pipeline_mode = #tpu.pipeline_mode<synchronous>, transform_indices = @transform_4, window_bounds = array<i64: 32, 1>}, {pipeline_mode = #tpu.pipeline_mode<synchronous>, transform_indices = @transform_5, window_bounds = array<i64: 32, 1>}, {transform_indices = @transform_6, window_bounds = array<i64: 1, 32, 128>}]} {
    %c0 = arith.constant 0 : index
    %c0_0 = arith.constant 0 : index
    %c0_1 = arith.constant 0 : index
    %0 = vector.load %arg2[%c0, %c0_0, %c0_1] : memref<1x16x128xbf16, #tpu.memory_space<vmem>>, vector<1x16x128xbf16>
    %1 = vector.shape_cast %0 : vector<1x16x128xbf16> to vector<16x128xbf16>
    %c0_2 = arith.constant 0 : index
    %c0_3 = arith.constant 0 : index
    %c0_4 = arith.constant 0 : index
    %c0_5 = arith.constant 0 : index
    %2 = vector.load %arg3[%c0_2, %c0_3, %c0_4, %c0_5] : memref<1x1x16x4xbf16, #tpu.memory_space<vmem>>, vector<1x1x16x4xbf16>
    %3 = vector.shape_cast %2 : vector<1x1x16x4xbf16> to vector<16x4xbf16>
    %4 = tpu.concatenate %1, %3 in 1 : vector<16x128xbf16>, vector<16x4xbf16> -> vector<16x132xbf16>
    %5 = vector.extract_strided_slice %4 {offsets = [0, 0], sizes = [16, 128], strides = [1, 1]} : vector<16x132xbf16> to vector<16x128xbf16>
    %6 = vector.extract_strided_slice %4 {offsets = [0, 2], sizes = [16, 128], strides = [1, 1]} : vector<16x132xbf16> to vector<16x128xbf16>
    %7 = vector.extract_strided_slice %4 {offsets = [0, 4], sizes = [16, 128], strides = [1, 1]} : vector<16x132xbf16> to vector<16x128xbf16>
    %8 = tpu.concatenate %5, %6, %7 in 0 : vector<16x128xbf16>, vector<16x128xbf16>, vector<16x128xbf16> -> vector<48x128xbf16>
    %c0_6 = arith.constant 0 : index
    %c0_7 = arith.constant 0 : index
    %9 = vector.load %arg4[%c0_6, %c0_7] : memref<32x48xbf16, #tpu.memory_space<vmem>>, vector<32x48xbf16>
    %cst = arith.constant dense<0.000000e+00> : vector<32x128xf32>
    %10 = tpu.matmul %9, %8, %cst {dimension_numbers = #tpu.dot_dimension_numbers<[1], [0], [0], [1], [0, 0, 1, 1], [], []>} : vector<32x48xbf16>, vector<48x128xbf16>, vector<32x128xf32> -> vector<32x128xf32>
    %c0_8 = arith.constant 0 : index
    %c0_9 = arith.constant 0 : index
    %11 = vector.load %arg5[%c0_8, %c0_9] : memref<32x1xf32, #tpu.memory_space<vmem>>, vector<32x1xf32>
    %12 = vector.broadcast %11 : vector<32x1xf32> to vector<32x128xf32>
    %13 = arith.addf %10, %12 : vector<32x128xf32>
    %cst_10 = arith.constant 0.000000e+00 : f32
    %14 = vector.broadcast %cst_10 : f32 to vector<32x128xf32>
    %15 = arith.maximumf %13, %14 : vector<32x128xf32>
    %c0_11 = arith.constant 0 : index
    %c0_12 = arith.constant 0 : index
    %16 = vector.load %arg6[%c0_11, %c0_12] : memref<32x1xf32, #tpu.memory_space<vmem>>, vector<32x1xf32>
    %17 = vector.broadcast %16 : vector<32x1xf32> to vector<32x128xf32>
    %18 = arith.mulf %15, %17 : vector<32x128xf32>
    %c0_13 = arith.constant 0 : index
    %c0_14 = arith.constant 0 : index
    %19 = vector.load %arg7[%c0_13, %c0_14] : memref<32x1xf32, #tpu.memory_space<vmem>>, vector<32x1xf32>
    %20 = vector.broadcast %19 : vector<32x1xf32> to vector<32x128xf32>
    %21 = arith.addf %18, %20 : vector<32x128xf32>
    %c0_15 = arith.constant 0 : index
    %c0_16 = arith.constant 0 : index
    %c0_17 = arith.constant 0 : index
    %22 = vector.load %arg8[%c0_15, %c0_16, %c0_17] : memref<1x32x128xf32, #tpu.memory_space<vmem>>, vector<1x32x128xf32>
    %23 = vector.shape_cast %22 : vector<1x32x128xf32> to vector<32x128xf32>
    %24 = vector.shape_cast %21 : vector<32x128xf32> to vector<1x32x128xf32>
    tpu.vector_store %arg8[%c0_15, %c0_16, %c0_17], %24 {strides = array<i32>} : memref<1x32x128xf32, #tpu.memory_space<vmem>>, vector<1x32x128xf32>,
    return
  }
  func.func @transform_0(%arg0: i32, %arg1: i32) -> (i32, i32, i32) {
    %c0_i32 = arith.constant 0 : i32
    %c0_i32_0 = arith.constant 0 : i32
    return %arg0, %c0_i32, %arg1 : i32, i32, i32
  }
  func.func @transform_1(%arg0: i32, %arg1: i32) -> (i32, i32, i32, i32) {
    %c0_i32 = arith.constant 0 : i32
    %c0_i32_0 = arith.constant 0 : i32
    %c0_i32_1 = arith.constant 0 : i32
    return %arg0, %arg1, %c0_i32, %c0_i32_0 : i32, i32, i32, i32
  }
  func.func @transform_2(%arg0: i32, %arg1: i32) -> (i32, i32) {
    %c0_i32 = arith.constant 0 : i32
    %c0_i32_0 = arith.constant 0 : i32
    %c0_i32_1 = arith.constant 0 : i32
    return %c0_i32, %c0_i32_0 : i32, i32
  }
  func.func @transform_3(%arg0: i32, %arg1: i32) -> (i32, i32) {
    %c0_i32 = arith.constant 0 : i32
    %c0_i32_0 = arith.constant 0 : i32
    %c0_i32_1 = arith.constant 0 : i32
    return %c0_i32, %c0_i32_0 : i32, i32
  }
  func.func @transform_4(%arg0: i32, %arg1: i32) -> (i32, i32) {
    %c0_i32 = arith.constant 0 : i32
    %c0_i32_0 = arith.constant 0 : i32
    %c0_i32_1 = arith.constant 0 : i32
    return %c0_i32, %c0_i32_0 : i32, i32
  }
  func.func @transform_5(%arg0: i32, %arg1: i32) -> (i32, i32) {
    %c0_i32 = arith.constant 0 : i32
    %c0_i32_0 = arith.constant 0 : i32
    %c0_i32_1 = arith.constant 0 : i32
    return %c0_i32, %c0_i32_0 : i32, i32
  }
  func.func @transform_6(%arg0: i32, %arg1: i32) -> (i32, i32, i32) {
    %c0_i32 = arith.constant 0 : i32
    %c0_i32_0 = arith.constant 0 : i32
    return %arg0, %c0_i32, %arg1 : i32, i32, i32
  }
}

</mosaic_0001>

<llo_original>
// kernel: tpu_custom_call.1
$region0: #{tpu_custom_call.1}
  #allocation0 [shape = 'u32[]', space=smem, size = 0x4, offset = 0x4, fixed_abs, tag = 'smem constant byte address 0x4 - core index']
  #allocation1 [shape = 'u32[144,128]{1,0:T(1,128)}', space=vmem, size = 0x12000, scoped, tag = 'internal scratch']
  %s0 = inlined_call_operand.vmem [shape: bf16[2,16,132], index: 0, kind: input, shape index: {}]
  %s1 = inlined_call_operand.vmem [shape: bf16[2,1,16,4], index: 1, kind: input, shape index: {}]
  %s2 = inlined_call_operand.vmem [shape: bf16[32,48], index: 2, kind: input, shape index: {}]
  %s3 = inlined_call_operand.vmem [shape: f32[32,1], index: 3, kind: input, shape index: {}]
  %s4 = inlined_call_operand.vmem [shape: f32[32,1], index: 4, kind: input, shape index: {}]
  %s5 = inlined_call_operand.vmem [shape: f32[32,1], index: 5, kind: input, shape index: {}]
  %s6 = inlined_call_operand.hbm [shape: f32[2,32,128], index: 6, kind: output, shape index: {}]
  %s7 = sld [smem:[#allocation0]]
  $region98: #{tpu_custom_call.1} parent=0
    _
  %s9 = ssub.s32 1, %s7
  %s10 = scalar_select 0, %s9, %s7
  $region1: #{tpu_custom_call.1} parent=0
    #allocation2 [shape = 'u8[8192]{0}', space=vmem, size = 0x2000, scoped, tag = 'input window, operand 0']
    #allocation3 [shape = 'u8[32768]{0}', space=vmem, size = 0x8000, scoped, tag = 'output window, operand 0']
    #allocation4 [shape = 's32[2]{0}', space=sflag, size = 0x8, scoped, tag = 'scoped memory for tpu_custom_call.1']
    %11 = vsyncpa [#allocation4], 0
    %s12 = scalar_lea.sflag [#allocation4], 1
    %13 = vsyncpa %s12, 0
    loop: start=0, step=1, limit=4
    $region2: #{tpu_custom_call.1} parent=1 // loop_pre_header
      _
    $region3: #{tpu_custom_call.1} parent=1 // loop_header
      %s15 = sphi 0, %s19
      %p16 = scmp.ge.s32.totalorder %s15, 4
      %s22 = sphi 0, %s34
      %s23 = sphi 0, %s30
      %s24 = sphi 0, %s22
      %s25 = sphi 0, %s23
      %s26 = sphi 0, %s24
      %s27 = sphi 0, %s25
      %s39 = sphi 0, %s41
      %s42 = sphi 0, %s39
      %s43 = sphi 0, %s42
      %s59 = sphi 0, %s43
      %s67 = sphi 0, %s69
      %s70 = sphi 0, %s67
      %s71 = sphi 0, %s70
      %s87 = sphi 0, %s71
      %s91 = sphi 0, %s91
      %s93 = sphi 0, %s91
      %s94 = sphi 0, %s93
      %s108 = sphi 0, %s94
      %s112 = sphi 0, %s112
      %s114 = sphi 0, %s112
      %s115 = sphi 0, %s114
      %s129 = sphi 0, %s115
      %s133 = sphi 0, %s133
      %s135 = sphi 0, %s133
      %s136 = sphi 0, %s135
      %s150 = sphi 0, %s136
      %s154 = sphi 0, %s154
      %s156 = sphi 0, %s154
      %s157 = sphi 0, %s156
      %s171 = sphi 0, %s157
      %s179 = sphi 0, %s181
      %s182 = sphi 0, %s179
      %s183 = sphi 0, %s182
      %s199 = sphi 0, %s183
    $region4: #{tpu_custom_call.1} parent=1 // loop_header_branch
      %18 = sbr.rel (%p16) target = $region8
    $region5: #{tpu_custom_call.1} parent=1 // loop_body
      %s20 = ssub.s32 %s15, 1
      %s21 = ssub.s32 %s15, 2
      %s28 = sadd.s32 1, %s23
      %p29 = scmp.ge.s32.totalorder %s28, 1
      %s30 = scalar_select %p29, 0, %s28
      %s31 = sadd.s32 1, %s22
      %s32 = scalar_select %p29, %s31, %s22
      %p33 = scmp.ge.s32.totalorder %s32, 2
      %s34 = scalar_select %p33, 0, %s32
      %s35 = ssub.s32 %s22, %s34
      %s36 = ssub.s32 %s23, %s30
      %s37 = sor.u32 %s35, %s36
      %p38 = scmp.eq.s32.totalorder %s37, 0
      %s40 = sadd.s32 %s39, 1
      %s41 = scalar_select %p38, %s39, %s40
      %p44 = pneg %p38
      %p45 = scmp.eq.s32.totalorder %s15, 1
      %p46 = por %p44, %p45
      %p47 = scmp.ne.s32.totalorder %s39, %s42
      %p48 = scmp.eq.s32.totalorder %s15, 0
      %p49 = por %p47, %p48
      %p50 = scmp.ne.s32.totalorder %s39, %s42
      %p51 = scmp.eq.s32.totalorder %s20, 1
      %p52 = por %p50, %p51
      %p53 = scmp.ne.s32.totalorder %s42, %s43
      %p54 = scmp.eq.s32.totalorder %s20, 0
      %p55 = por %p53, %p54
      %p56 = scmp.ne.s32.totalorder %s42, %s43
      %p57 = scmp.eq.s32.totalorder %s21, 1
      %p58 = por %p56, %p57
      %p60 = scmp.ne.s32.totalorder %s43, %s59
      %p61 = scmp.eq.s32.totalorder %s21, 0
      %p62 = por %p60, %p61
      %s63 = ssub.s32 %s22, %s34
      %s64 = ssub.s32 %s23, %s30
      %s65 = sor.u32 %s63, %s64
      %p66 = scmp.eq.s32.totalorder %s65, 0
      %s68 = sadd.s32 %s67, 1
      %s69 = scalar_select %p66, %s67, %s68
      %p72 = pneg %p66
      %p73 = scmp.eq.s32.totalorder %s15, 1
      %p74 = por %p72, %p73
      %p75 = scmp.ne.s32.totalorder %s67, %s70
      %p76 = scmp.eq.s32.totalorder %s15, 0
      %p77 = por %p75, %p76
      %p78 = scmp.ne.s32.totalorder %s67, %s70
      %p79 = scmp.eq.s32.totalorder %s20, 1
      %p80 = por %p78, %p79
      %p81 = scmp.ne.s32.totalorder %s70, %s71
      %p82 = scmp.eq.s32.totalorder %s20, 0
      %p83 = por %p81, %p82
      %p84 = scmp.ne.s32.totalorder %s70, %s71
      %p85 = scmp.eq.s32.totalorder %s21, 1
      %p86 = por %p84, %p85
      %p88 = scmp.ne.s32.totalorder %s71, %s87
      %p89 = scmp.eq.s32.totalorder %s21, 0
      %p90 = por %p88, %p89
      %s92 = sadd.s32 %s91, 1
      %p95 = scmp.eq.s32.totalorder %s15, 1
      %p96 = scmp.ne.s32.totalorder %s91, %s93
      %p97 = scmp.eq.s32.totalorder %s15, 0
      %p98 = por %p96, %p97
      %p99 = scmp.ne.s32.totalorder %s91, %s93
      %p100 = scmp.eq.s32.totalorder %s20, 1
      %p101 = por %p99, %p100
      %p102 = scmp.ne.s32.totalorder %s93, %s94
      %p103 = scmp.eq.s32.totalorder %s20, 0
      %p104 = por %p102, %p103
      %p105 = scmp.ne.s32.totalorder %s93, %s94
      %p106 = scmp.eq.s32.totalorder %s21, 1
      %p107 = por %p105, %p106
      %p109 = scmp.ne.s32.totalorder %s94, %s108
      %p110 = scmp.eq.s32.totalorder %s21, 0
      %p111 = por %p109, %p110
      %s113 = sadd.s32 %s112, 1
      %p116 = scmp.eq.s32.totalorder %s15, 1
      %p117 = scmp.ne.s32.totalorder %s112, %s114
      %p118 = scmp.eq.s32.totalorder %s15, 0
      %p119 = por %p117, %p118
      %p120 = scmp.ne.s32.totalorder %s112, %s114
      %p121 = scmp.eq.s32.totalorder %s20, 1
      %p122 = por %p120, %p121
      %p123 = scmp.ne.s32.totalorder %s114, %s115
      %p124 = scmp.eq.s32.totalorder %s20, 0
      %p125 = por %p123, %p124
      %p126 = scmp.ne.s32.totalorder %s114, %s115
      %p127 = scmp.eq.s32.totalorder %s21, 1
      %p128 = por %p126, %p127
      %p130 = scmp.ne.s32.totalorder %s115, %s129
      %p131 = scmp.eq.s32.totalorder %s21, 0
      %p132 = por %p130, %p131
      %s134 = sadd.s32 %s133, 1
      %p137 = scmp.eq.s32.totalorder %s15, 1
      %p138 = scmp.ne.s32.totalorder %s133, %s135
      %p139 = scmp.eq.s32.totalorder %s15, 0
      %p140 = por %p138, %p139
      %p141 = scmp.ne.s32.totalorder %s133, %s135
      %p142 = scmp.eq.s32.totalorder %s20, 1
      %p143 = por %p141, %p142
      %p144 = scmp.ne.s32.totalorder %s135, %s136
      %p145 = scmp.eq.s32.totalorder %s20, 0
      %p146 = por %p144, %p145
      %p147 = scmp.ne.s32.totalorder %s135, %s136
      %p148 = scmp.eq.s32.totalorder %s21, 1
      %p149 = por %p147, %p148
      %p151 = scmp.ne.s32.totalorder %s136, %s150
      %p152 = scmp.eq.s32.totalorder %s21, 0
      %p153 = por %p151, %p152
      %s155 = sadd.s32 %s154, 1
      %p158 = scmp.eq.s32.totalorder %s15, 1
      %p159 = scmp.ne.s32.totalorder %s154, %s156
      %p160 = scmp.eq.s32.totalorder %s15, 0
      %p161 = por %p159, %p160
      %p162 = scmp.ne.s32.totalorder %s154, %s156
      %p163 = scmp.eq.s32.totalorder %s20, 1
      %p164 = por %p162, %p163
      %p165 = scmp.ne.s32.totalorder %s156, %s157
      %p166 = scmp.eq.s32.totalorder %s20, 0
      %p167 = por %p165, %p166
      %p168 = scmp.ne.s32.totalorder %s156, %s157
      %p169 = scmp.eq.s32.totalorder %s21, 1
      %p170 = por %p168, %p169
      %p172 = scmp.ne.s32.totalorder %s157, %s171
      %p173 = scmp.eq.s32.totalorder %s21, 0
      %p174 = por %p172, %p173
      %s175 = ssub.s32 %s22, %s34
      %s176 = ssub.s32 %s23, %s30
      %s177 = sor.u32 %s175, %s176
      %p178 = scmp.eq.s32.totalorder %s177, 0
      %s180 = sadd.s32 %s179, 1
      %s181 = scalar_select %p178, %s179, %s180
      %p184 = pneg %p178
      %p185 = scmp.eq.s32.totalorder %s15, 1
      %p186 = por %p184, %p185
      %p187 = scmp.ne.s32.totalorder %s179, %s182
      %p188 = scmp.eq.s32.totalorder %s15, 0
      %p189 = por %p187, %p188
      %p190 = scmp.ne.s32.totalorder %s179, %s182
      %p191 = scmp.eq.s32.totalorder %s20, 1
      %p192 = por %p190, %p191
      %p193 = scmp.ne.s32.totalorder %s182, %s183
      %p194 = scmp.eq.s32.totalorder %s20, 0
      %p195 = por %p193, %p194
      %p196 = scmp.ne.s32.totalorder %s182, %s183
      %p197 = scmp.eq.s32.totalorder %s21, 1
      %p198 = por %p196, %p197
      %p200 = scmp.ne.s32.totalorder %s183, %s199
      %p201 = scmp.eq.s32.totalorder %s21, 0
      %p202 = por %p200, %p201
      %p203 = scmp.le.s32.totalorder 1, %s15
      %p204 = scmp.lt.s32.totalorder %s15, 3
      %p205 = pnand %p203, %p204
      %p206 = pneg %p205
      // Predicated region
      $region9: #{tpu_custom_call.1} parent=5 // pred_check
        _
      $region10: #{tpu_custom_call.1} parent=5 // pred_check_branch
        %208 = sbr.rel (%p205) target = $region12
      $region11: #{tpu_custom_call.1} parent=5 // pred_region
        %s209 = ssub.s32 %s15, 1
        // Predicated region
        $region13: #{tpu_custom_call.1} parent=11 // pred_check
          %p210 = pneg %p104
        $region14: #{tpu_custom_call.1} parent=11 // pred_check_branch
          %212 = sbr.rel (%p210) target = $region16
        $region15: #{tpu_custom_call.1} parent=11 // pred_region
          _
        $region16: #{tpu_custom_call.1} parent=11 // pred_fallthru
          _
        // Predicated region
        $region17: #{tpu_custom_call.1} parent=11 // pred_check
          %p213 = pneg %p125
        $region18: #{tpu_custom_call.1} parent=11 // pred_check_branch
          %215 = sbr.rel (%p213) target = $region20
        $region19: #{tpu_custom_call.1} parent=11 // pred_region
          _
        $region20: #{tpu_custom_call.1} parent=11 // pred_fallthru
          _
        // Predicated region
        $region21: #{tpu_custom_call.1} parent=11 // pred_check
          %p216 = pneg %p146
        $region22: #{tpu_custom_call.1} parent=11 // pred_check_branch
          %218 = sbr.rel (%p216) target = $region24
        $region23: #{tpu_custom_call.1} parent=11 // pred_region
          _
        $region24: #{tpu_custom_call.1} parent=11 // pred_fallthru
          _
        // Predicated region
        $region25: #{tpu_custom_call.1} parent=11 // pred_check
          %p219 = pneg %p167
        $region26: #{tpu_custom_call.1} parent=11 // pred_check_branch
          %221 = sbr.rel (%p219) target = $region28
        $region27: #{tpu_custom_call.1} parent=11 // pred_region
          _
        $region28: #{tpu_custom_call.1} parent=11 // pred_fallthru
          _
      $region12: #{tpu_custom_call.1} parent=5 // pred_fallthru
        _
      %p222 = scmp.lt.s32.totalorder %s15, 2
      // Predicated region
      $region29: #{tpu_custom_call.1} parent=5 // pred_check
        %p223 = pneg %p222
      $region30: #{tpu_custom_call.1} parent=5 // pred_check_branch
        %225 = sbr.rel (%p223) target = $region32
      $region31: #{tpu_custom_call.1} parent=5 // pred_region
        // Predicated region
        $region33: #{tpu_custom_call.1} parent=31 // pred_check
          %p226 = pneg %p49
        $region34: #{tpu_custom_call.1} parent=31 // pred_check_branch
          %228 = sbr.rel (%p226) target = $region36
        $region35: #{tpu_custom_call.1} parent=31 // pred_region
          %s229 = sand.u32 %s39, 1
          %s230 = sand.u32 %s39, 1
          %s231 = smul.addr %s230, 8
          %s232 = scalar_lea.vmem [#allocation2], %s231
          %s233 = smul.addr %s22, 4
          %s234 = sadd.s32 %s23, %s233
          %s235 = smul.addr %s234, 4
          %s236 = scalar_lea.vmem %s0, %s235
          // Predicated region
          $region37: #{tpu_custom_call.1} parent=35 // pred_check
            _
          $region38: #{tpu_custom_call.1} parent=35 // pred_check_branch
            %238 = sbr.rel (0) target = $region40
          $region39: #{tpu_custom_call.1} parent=35 // pred_region
            // Predicated region
            $region41: #{tpu_custom_call.1} parent=39 // pred_check
              _
            $region42: #{tpu_custom_call.1} parent=39 // pred_check_branch
              %240 = sbr.rel target = $region44
            $region43: #{tpu_custom_call.1} parent=39 // pred_region
              // Predicated region
              $region56: #{tpu_custom_call.1} parent=43 // pred_check
                _
              $region57: #{tpu_custom_call.1} parent=43 // pred_check_branch
                %257 = sbr.rel (0) target = $region59
              $region58: #{tpu_custom_call.1} parent=43 // pred_region
                loop: start=0, step=1, limit=1
                $region60: #{tpu_custom_call.1} parent=58 // loop_pre_header
                  _
                $region61: #{tpu_custom_call.1} parent=58 // loop_header
                  %s259 = sphi 0, %s263
                  %p260 = scmp.ge.s32.totalorder %s259, 1
                  %s264 = sphi %s236, %s236
                  %s265 = sphi %s232, %s232
                $region62: #{tpu_custom_call.1} parent=58 // loop_header_branch
                  %262 = sbr.rel (%p260) target = $region66
                $region63: #{tpu_custom_call.1} parent=58 // loop_body
                  _
                $region64: #{tpu_custom_call.1} parent=58 // loop_footer
                  %s263 = sadd.s32 1, %s259
                $region65: #{tpu_custom_call.1} parent=58 // loop_footer_branch
                  %258 = sbr.rel target = $region61
                $region66: #{tpu_custom_call.1} parent=58 // loop_exit
                  _
                loop: start=0, step=1, limit=1
                $region67: #{tpu_custom_call.1} parent=58 // loop_pre_header
                  _
                $region68: #{tpu_custom_call.1} parent=58 // loop_header
                  %s268 = sphi 0, %s272
                  %p269 = scmp.ge.s32.totalorder %s268, 1
                  %s273 = sphi %s236, %s236
                  %s274 = sphi %s232, %s232
                $region69: #{tpu_custom_call.1} parent=58 // loop_header_branch
                  %271 = sbr.rel (%p269) target = $region73
                $region70: #{tpu_custom_call.1} parent=58 // loop_body
                  %v275 = vld [vmem:[%s273] sm:$0xf]
                  %276 = vst [vmem:[%s274] sm:$0xf] %v275
                  %v277 = vld [vmem:[%s273 + $0x8] sm:$0xf]
                  %278 = vst [vmem:[%s274 + $0x4] sm:$0xf] %v277
                $region71: #{tpu_custom_call.1} parent=58 // loop_footer
                  %s272 = sadd.s32 1, %s268
                $region72: #{tpu_custom_call.1} parent=58 // loop_footer_branch
                  %267 = sbr.rel target = $region68
                $region73: #{tpu_custom_call.1} parent=58 // loop_exit
                  _
              $region59: #{tpu_custom_call.1} parent=43 // pred_fallthru
                _
            $region44: #{tpu_custom_call.1} parent=39 // pred_fallthru
              _
            // Predicated region
            $region45: #{tpu_custom_call.1} parent=39 // pred_check
              _
            $region46: #{tpu_custom_call.1} parent=39 // pred_check_branch
              %242 = sbr.rel (0) target = $region48
            $region47: #{tpu_custom_call.1} parent=39 // pred_region
              loop: start=0, step=1, limit=1
              $region49: #{tpu_custom_call.1} parent=47 // loop_pre_header
                _
              $region50: #{tpu_custom_call.1} parent=47 // loop_header
                %s245 = sphi 0, %s249
                %p246 = scmp.ge.s32.totalorder %s245, 1
                %s250 = sphi %s236, %s236
                %s251 = sphi %s232, %s232
              $region51: #{tpu_custom_call.1} parent=47 // loop_header_branch
                %248 = sbr.rel (%p246) target = $region55
              $region52: #{tpu_custom_call.1} parent=47 // loop_body
                %v252 = vld [vmem:[%s250] sm:$0xf]
                %253 = vst [vmem:[%s251] sm:$0xf] %v252
                %v254 = vld [vmem:[%s250 + $0x8] sm:$0xf]
                %255 = vst [vmem:[%s251 + $0x4] sm:$0xf] %v254
              $region53: #{tpu_custom_call.1} parent=47 // loop_footer
                %s249 = sadd.s32 1, %s245
              $region54: #{tpu_custom_call.1} parent=47 // loop_footer_branch
                %244 = sbr.rel target = $region50
              $region55: #{tpu_custom_call.1} parent=47 // loop_exit
                _
            $region48: #{tpu_custom_call.1} parent=39 // pred_fallthru
              _
          $region40: #{tpu_custom_call.1} parent=35 // pred_fallthru
            _
          %279 = vnop
        $region36: #{tpu_custom_call.1} parent=31 // pred_fallthru
          _
        // Predicated region
        $region74: #{tpu_custom_call.1} parent=31 // pred_check
          %p280 = pneg %p77
        $region75: #{tpu_custom_call.1} parent=31 // pred_check_branch
          %282 = sbr.rel (%p280) target = $region77
        $region76: #{tpu_custom_call.1} parent=31 // pred_region
          %p283 = scmp.lt.s32.totalorder %s22, 1
          %s284 = scalar_select %p283, %s22, 1
          %p285 = scmp.lt.s32.totalorder %s23, 0
          %s286 = scalar_select %p285, %s23, 0
          %s287 = smul.addr %s286, 2
          %s288 = smul.addr %s284, 2
          %s289 = sadd.s32 %s287, %s288
          %s290 = smul.addr %s289, 4
          %s291 = scalar_lea.vmem %s1, %s290
        $region77: #{tpu_custom_call.1} parent=31 // pred_fallthru
          _
      $region32: #{tpu_custom_call.1} parent=5 // pred_fallthru
        _
      %p292 = scmp.le.s32.totalorder 1, %s15
      %p293 = scmp.lt.s32.totalorder %s15, 3
      %p294 = pnand %p292, %p293
      %p295 = pneg %p294
      // Predicated region
      $region78: #{tpu_custom_call.1} parent=5 // pred_check
        _
      $region79: #{tpu_custom_call.1} parent=5 // pred_check_branch
        %297 = sbr.rel (%p294) target = $region81
      $region80: #{tpu_custom_call.1} parent=5 // pred_region
        %s298 = ssub.s32 %s15, 1
        %s299 = sand.u32 %s42, 1
        %s300 = sand.u32 %s42, 1
        %s301 = smul.addr %s300, 8
        %s302 = scalar_lea.vmem [#allocation2], %s301
        // Predicated region
        $region82: #{tpu_custom_call.1} parent=80 // pred_check
          %p303 = pneg %p55
        $region83: #{tpu_custom_call.1} parent=80 // pred_check_branch
          %305 = sbr.rel (%p303) target = $region85
        $region84: #{tpu_custom_call.1} parent=80 // pred_region
          _
        $region85: #{tpu_custom_call.1} parent=80 // pred_fallthru
          _
        %s306 = sand.u32 %s42, 1
        %s307 = sand.u32 %s42, 1
        %s308 = smul.addr %s307, 8
        %s309 = scalar_lea.vmem [#allocation2], %s308
        %p310 = pneg %p55
        %p311 = pneg %p52
        %p312 = scmp.lt.s32.totalorder %s24, 1
        %s313 = scalar_select %p312, %s24, 1
        %p314 = scmp.lt.s32.totalorder %s25, 0
        %s315 = scalar_select %p314, %s25, 0
        %s316 = smul.addr %s315, 2
        %s317 = smul.addr %s313, 2
        %s318 = sadd.s32 %s316, %s317
        %s319 = smul.addr %s318, 4
        %s320 = scalar_lea.vmem %s1, %s319
        %p321 = pneg %p83
        %p322 = pneg %p80
        %p323 = pneg %p104
        %p324 = pneg %p101
        %p325 = pneg %p125
        %p326 = pneg %p122
        %p327 = pneg %p146
        %p328 = pneg %p143
        %p329 = pneg %p167
        %p330 = pneg %p164
        %p331 = pneg %p195
        %p332 = pneg %p192
        %s333 = sand.u32 %s182, 1
        %s334 = scalar_lea.sflag [#allocation4], %s333
        %s335 = sand.u32 %s182, 1
        %s336 = smul.addr %s335, 32
        %s337 = scalar_lea.vmem [#allocation3], %s336
        %p338 = scmp.lt.s32.totalorder %s24, 1
        %s339 = scalar_select %p338, %s24, 1
        %p340 = scmp.lt.s32.totalorder %s25, 0
        %s341 = scalar_select %p340, %s25, 0
        %s342 = smul.addr %s341, 2
        %s343 = smul.addr %s339, 2
        %s344 = sadd.s32 %s342, %s343
        %s345 = smul.addr %s344, 4
        %s346 = scalar_lea.vmem %s1, %s345
        %v348 = vld [vmem:[%s302] sm:$0xf]
        %v349 = vld [vmem:[%s302 + $0x4] sm:$0xf]
        %v350 = vld [vmem:[%s346] sm:$0xf]
        %v351 = vld [vmem:[%s346 + $0x4] sm:$0xf]
        %v354 = vunpack.c.l.b16 %v348
        %v355 = vunpack.c.l.b16 %v349
        %v356 = vpack.c.b16 %v355, %v354
        %v360 = vunpack.c.l.b16 %v350
        %v361 = vunpack.c.l.b16 %v351
        %v362 = vpack.c.b16 %v361, %v360
        %363 = vrot.lane.b32.xlu0 %v356, 126
        %v364 = vpop.permute.xlu0 %363
        %365 = vrot.lane.b32.xlu0 %v362, 126
        %v366 = vpop.permute.xlu0 %365
        %vm367 = vcmask 1031168
        %v368 = vsel %vm367, %v364, %v366
        %370 = vrot.lane.b32.xlu0 %v356, 124
        %v371 = vpop.permute.xlu0 %370
        %372 = vrot.lane.b32.xlu0 %v362, 124
        %v373 = vpop.permute.xlu0 %372
        %vm374 = vcmask 1014784
        %v375 = vsel %vm374, %v371, %v373
        %v377 = vld [vmem:[%s2] sm:$0xf]
        %v378 = vld [vmem:[%s2 + $0x4] sm:$0xf]
        %v379 = vld [vmem:[%s2 + $0x8] sm:$0xf]
        %v380 = vld [vmem:[%s2 + $0xc] sm:$0xf]
        %v381 = vld [vmem:[%s3] sm:$0xff]
        %v382 = vld [vmem:[%s3 + $0x8] sm:$0xff]
        %v383 = vld [vmem:[%s3 + $0x10] sm:$0xff]
        %v384 = vld [vmem:[%s3 + $0x18] sm:$0xff]
        %386 = vset.pattern.permute.xlu0 0
        %387 = vperm.xlu0 %386, %v381
        %v388 = vpop.permute.xlu0 %387
        %391 = vset.pattern.permute.xlu0 0
        %392 = vperm.xlu0 %391, %v382
        %v393 = vpop.permute.xlu0 %392
        %396 = vset.pattern.permute.xlu0 0
        %397 = vperm.xlu0 %396, %v383
        %v398 = vpop.permute.xlu0 %397
        %401 = vset.pattern.permute.xlu0 0
        %402 = vperm.xlu0 %401, %v384
        %v403 = vpop.permute.xlu0 %402
        %v409 = vunpack.c.l.b16 %v377
        %v410 = vunpack.c.l.b16 %v378
        %v411 = vunpack.c.l.b16 %v379
        %v412 = vunpack.c.l.b16 %v380
        %v413 = vpack.c.b16 %v410, %v409
        %v414 = vpack.c.b16 %v412, %v411
        %vm415 = vcmask 392192
        %v417 = vsel %vm415, %v413, 0
        %v420 = vsel %vm415, %v414, 0
        %422 = vmatprep.subr.bf16.mxu0 0
        %423 = vmatpush1.bf16.msra.mxu0 %v356
        %424 = vmatprep.subr.bf16.mxu0 0
        %425 = vmatpush1.bf16.msra.mxu0 %v368
        %426 = vmatprep.subr.bf16.mxu0 0
        %427 = vmatpush1.bf16.msra.mxu0 %v375
        %428 = vmatprep.subr.bf16.mxu0 0
        %429 = vmatpush1.bf16.msra.mxu0 0
        %430 = vmatprep.subr.bf16.mxu0 0
        %431 = vmatpush1.bf16.msra.mxu0 0
        %432 = vmatprep.subr.bf16.mxu0 0
        %433 = vmatpush1.bf16.msra.mxu0 0
        %434 = vmatprep.subr.bf16.mxu0 0
        %435 = vmatpush1.bf16.msra.mxu0 0
        %436 = vmatprep.subr.bf16.mxu0 0
        %437 = vmatpush1.bf16.msra.mxu0 0
        %438 = vmatprep.subr.bf16.mxu0 0
        %439 = vmatpush1.bf16.msra.mxu0 0
        %440 = vmatprep.subr.bf16.mxu0 0
        %441 = vmatpush1.bf16.msra.mxu0 0
        %442 = vmatprep.subr.bf16.mxu0 0
        %443 = vmatpush1.bf16.msra.mxu0 0
        %444 = vmatprep.subr.bf16.mxu0 0
        %445 = vmatpush1.bf16.msra.mxu0 0
        %446 = vmatprep.subr.bf16.mxu0 0
        %447 = vmatpush1.bf16.msra.mxu0 0
        %448 = vmatprep.subr.bf16.mxu0 0
        %449 = vmatpush1.bf16.msra.mxu0 0
        %450 = vmatprep.subr.bf16.mxu0 0
        %451 = vmatpush1.bf16.msra.mxu0 0
        %452 = vmatprep.subr.bf16.mxu0 0
        %453 = vmatpush1.bf16.msra.mxu0 0
        %454 = vmatprep.mubr.bf16.mxu0 0
        %455 = vmatmul.mubr.bf16.gmra.mrb[0].mxu0 %v417
        %v456 = vpop.f32.mrb[0].mxu0
        %v457 = vadd.f32 %v388, %v456
        %v458 = vpop.f32.mrb[0].mxu0
        %v459 = vpop.f32.mrb[0].mxu0
        %v460 = vadd.f32 %v393, %v459
        %v461 = vpop.f32.mrb[0].mxu0
        %462 = vmatprep.mubr.bf16.mxu0 0
        %463 = vmatmul.mubr.bf16.gmra.mrb[0].mxu0 %v420
        %v464 = vpop.f32.mrb[0].mxu0
        %v465 = vadd.f32 %v398, %v464
        %v466 = vpop.f32.mrb[0].mxu0
        %v467 = vpop.f32.mrb[0].mxu0
        %v468 = vadd.f32 %v403, %v467
        %v469 = vpop.f32.mrb[0].mxu0
        %470 = vdwg.mxu0
        %v471 = vmax.f32 %v457, 0.0
        %v472 = vmax.f32 %v460, 0.0
        %v473 = vmax.f32 %v465, 0.0
        %v474 = vmax.f32 %v468, 0.0
        %v475 = vld [vmem:[%s4] sm:$0xff]
        %v476 = vld [vmem:[%s4 + $0x8] sm:$0xff]
        %v477 = vld [vmem:[%s4 + $0x10] sm:$0xff]
        %v478 = vld [vmem:[%s4 + $0x18] sm:$0xff]
        %480 = vset.pattern.permute.xlu0 0
        %481 = vperm.xlu0 %480, %v475
        %v482 = vpop.permute.xlu0 %481
        %485 = vset.pattern.permute.xlu0 0
        %486 = vperm.xlu0 %485, %v476
        %v487 = vpop.permute.xlu0 %486
        %490 = vset.pattern.permute.xlu0 0
        %491 = vperm.xlu0 %490, %v477
        %v492 = vpop.permute.xlu0 %491
        %495 = vset.pattern.permute.xlu0 0
        %496 = vperm.xlu0 %495, %v478
        %v497 = vpop.permute.xlu0 %496
        %v499 = vmul.f32 %v471, %v482
        %v500 = vmul.f32 %v472, %v487
        %v501 = vmul.f32 %v473, %v492
        %v502 = vmul.f32 %v474, %v497
        %v503 = vld [vmem:[%s5] sm:$0xff]
        %v504 = vld [vmem:[%s5 + $0x8] sm:$0xff]
        %v505 = vld [vmem:[%s5 + $0x10] sm:$0xff]
        %v506 = vld [vmem:[%s5 + $0x18] sm:$0xff]
        %508 = vset.pattern.permute.xlu0 0
        %509 = vperm.xlu0 %508, %v503
        %v510 = vpop.permute.xlu0 %509
        %513 = vset.pattern.permute.xlu0 0
        %514 = vperm.xlu0 %513, %v504
        %v515 = vpop.permute.xlu0 %514
        %518 = vset.pattern.permute.xlu0 0
        %519 = vperm.xlu0 %518, %v505
        %v520 = vpop.permute.xlu0 %519
        %523 = vset.pattern.permute.xlu0 0
        %524 = vperm.xlu0 %523, %v506
        %v525 = vpop.permute.xlu0 %524
        %v527 = vadd.f32 %v499, %v510
        %v528 = vadd.f32 %v500, %v515
        %v529 = vadd.f32 %v501, %v520
        %v530 = vadd.f32 %v502, %v525
        %531 = vst [vmem:[%s337] sm:$0xff] %v527
        %532 = vst [vmem:[%s337 + $0x8] sm:$0xff] %v528
        %533 = vst [vmem:[%s337 + $0x10] sm:$0xff] %v529
        %534 = vst [vmem:[%s337 + $0x18] sm:$0xff] %v530
        %s535 = sand.u32 %s182, 1
        %s536 = scalar_lea.sflag [#allocation4], %s535
        %s537 = sand.u32 %s182, 1
        %s538 = smul.addr %s537, 32
        %s539 = scalar_lea.vmem [#allocation3], %s538
        // Predicated region
        $region86: #{tpu_custom_call.1} parent=80 // pred_check
          %p540 = pneg %p192
        $region87: #{tpu_custom_call.1} parent=80 // pred_check_branch
          %542 = sbr.rel (%p540) target = $region89
        $region88: #{tpu_custom_call.1} parent=80 // pred_region
          %s544 = ssub.s32 512, 512
          %545 = vsyncadd %s536, %s544
          %s546 = smul.addr %s24, 4
          %s547 = sadd.s32 %s25, %s546
          %s548 = smul.addr %s547, 128
          %s549 = scalar_lea.hbm %s6, %s548
          %s550 = sshll.u32 %s539, 4
          %s551 = int_to_ptr.vmem [resolvable:$true] %s550
          %556 = dma.vmem_to_hbm [thread:$0]  %s551, 512, %s549, %s536, 128, 128, 8
        $region89: #{tpu_custom_call.1} parent=80 // pred_fallthru
          _
      $region81: #{tpu_custom_call.1} parent=5 // pred_fallthru
        _
      %p557 = scmp.le.s32.totalorder 2, %s15
      // Predicated region
      $region90: #{tpu_custom_call.1} parent=5 // pred_check
        %p558 = pneg %p557
      $region91: #{tpu_custom_call.1} parent=5 // pred_check_branch
        %560 = sbr.rel (%p558) target = $region93
      $region92: #{tpu_custom_call.1} parent=5 // pred_region
        %s561 = ssub.s32 %s15, 2
        // Predicated region
        $region94: #{tpu_custom_call.1} parent=92 // pred_check
          %p562 = pneg %p198
        $region95: #{tpu_custom_call.1} parent=92 // pred_check_branch
          %564 = sbr.rel (%p562) target = $region97
        $region96: #{tpu_custom_call.1} parent=92 // pred_region
          %s565 = sand.u32 %s183, 1
          %s566 = scalar_lea.sflag [#allocation4], %s565
          %s567 = sand.u32 %s183, 1
          %s568 = smul.addr %s567, 32
          %s569 = scalar_lea.vmem [#allocation3], %s568
          %570 = dma.done %s566, 512
        $region97: #{tpu_custom_call.1} parent=92 // pred_fallthru
          _
      $region93: #{tpu_custom_call.1} parent=5 // pred_fallthru
        _
    $region6: #{tpu_custom_call.1} parent=1 // loop_footer
      %s19 = sadd.s32 1, %s15
    $region7: #{tpu_custom_call.1} parent=1 // loop_footer_branch
      %14 = sbr.rel target = $region3
    $region8: #{tpu_custom_call.1} parent=1 // loop_exit
      _
    %571 = vsyncpa [#allocation4], 1
    %s572 = scalar_lea.sflag [#allocation4], 1
    %573 = vsyncpa %s572, 1

</llo_original>
